<compile_context>
chip_gen: v6e
topology: v6e:2x2x1
jax: 0.10.0
libtpu: 0.0.40
codegen_flags: <defaults>
</compile_context>

<pallas_src>
import jax
import jax.numpy as jnp
import numpy as np
from jax.experimental import pallas as pl
from jax.experimental.pallas import tpu as pltpu

EPS = 1e-5  # nn.BatchNorm1d default


# --------------------------------------------------------------------------
# Fused single-pass kernel: whole (B, tf, T) feature block resident in VMEM.
# --------------------------------------------------------------------------
def cbn1d_fused_kernel(x_ref, gamma_ref, beta_ref, o_ref):
    # x_ref     : (B, TF, T)  feature block, NCL layout (T on the lane axis)
    # gamma_ref : (B, TF)     conditional scale  (conv_gamma(c), from wrapper)
    # beta_ref  : (B, TF)     conditional shift  (conv_beta(c),  from wrapper)
    x = x_ref[...].astype(jnp.float32)          # upcast once per tile
    B, TF, T = x.shape
    n = B * T

    # Batch-axis sum first (VPU element-wise adds), then ONE cross-lane (XLU)
    # reduction over T per feature row.
    mean = jnp.sum(jnp.sum(x, axis=0), axis=-1, keepdims=True) / n      # (TF, 1)
    xc = x - mean[None, :, :]                                           # centered
    var = jnp.sum(jnp.sum(xc * xc, axis=0), axis=-1, keepdims=True) / n  # (TF, 1)
    inv_std = jax.lax.rsqrt(var + EPS)                                  # (TF, 1)

    gamma = gamma_ref[...].astype(jnp.float32)                          # (B, TF)
    beta = beta_ref[...].astype(jnp.float32)

    # Fold BN into the conditional affine: out = (gamma*inv_std)*(x-mean)+beta
    scale = gamma[:, :, None] * inv_std[None, :, :]                     # (B, TF, 1)
    o_ref[...] = (scale * xc + beta[:, :, None]).astype(o_ref.dtype)


# --------------------------------------------------------------------------
# Two-pass fallback kernels (T-tiled): pass 1 stats, pass 2 apply.
# --------------------------------------------------------------------------
def cbn1d_stats_kernel(x_ref, sum_ref, sumsq_ref):
    # x_ref: (B, tf, tt); sum_ref/sumsq_ref: (tf, 1), resident across T axis.
    @pl.when(pl.program_id(1) == 0)
    def _():
        sum_ref[...] = jnp.zeros_like(sum_ref)
        sumsq_ref[...] = jnp.zeros_like(sumsq_ref)

    x = x_ref[...].astype(jnp.float32)
    xb = jnp.sum(x, axis=0)                         # (tf, tt)  batch first (VPU)
    xb2 = jnp.sum(x * x, axis=0)                    # (tf, tt)
    sum_ref[...] += jnp.sum(xb, axis=-1, keepdims=True)     # one XLU reduce/row
    sumsq_ref[...] += jnp.sum(xb2, axis=-1, keepdims=True)


def cbn1d_apply_kernel(x_ref, scale_ref, shift_ref, o_ref):
    # x_ref: (B, tf, tt); scale/shift: (B, tf) with BN folded into the affine.
    x = x_ref[...].astype(jnp.float32)
    o_ref[...] = (scale_ref[...][:, :, None] * x
                  + shift_ref[...][:, :, None]).astype(o_ref.dtype)


# --------------------------------------------------------------------------
# Generation-aware budgets / tiling helpers.
# --------------------------------------------------------------------------
def _vmem_capacity_bytes():
    try:
        cap = getattr(pltpu.get_tpu_info(), "vmem_capacity_bytes", None)
        if cap:
            return int(cap)
    except Exception:
        pass
    return 64 * 2**20  # assume the tightest (v7x per-TensorCore) if unknown


def _generation_budgets():
    cap = _vmem_capacity_bytes()
    if cap >= 100 * 2**20:
        # v5e / v6e: 128 MiB VMEM -> bigger blocks amortize per-step overhead.
        return 14 * 2**20, 80 * 2**20
    # v7x: 64 MiB per TensorCore -> tighter per-block budget and vmem cap.
    return 7 * 2**20, 36 * 2**20


def _pick_feature_tile(B, F, T, itemsize, budget_bytes):
    """Largest multiple-of-128 feature tile dividing F whose (B, tf, T) block
    fits the budget.  Prefers >= 2 feature blocks (v7x megacore).  Returns F
    when F is not a multiple of 128 (block dims then equal the full dims)."""
    if F % 128 != 0:
        return F
    tf_cap = F // 2 if F >= 256 else F
    tf = 128
    while (tf * 2 <= tf_cap and F % (tf * 2) == 0
           and B * (tf * 2) * T * itemsize <= budget_bytes):
        tf *= 2
    return tf


def _pick_t_tile(B, tf, T, itemsize, budget_bytes):
    if T % 128 != 0:
        return T
    tt_cap = T // 2 if T >= 256 else T
    tt = 128
    while (tt * 2 <= tt_cap and T % (tt * 2) == 0
           and B * tf * (tt * 2) * itemsize <= budget_bytes):
        tt *= 2
    return tt


# --------------------------------------------------------------------------
# Wrappers.
# --------------------------------------------------------------------------
def _cbn1d_two_pass(x, gamma, beta, itemsize, budget, vmem_cap):
    B, F, T = x.shape
    tf = 128 if F % 128 == 0 else F
    tt = _pick_t_tile(B, tf, T, itemsize, budget)
    grid = (F // tf, T // tt)
    blk = B * tf * tt * itemsize

    sums, sumsqs = pl.pallas_call(
        cbn1d_stats_kernel,
        out_shape=(jax.ShapeDtypeStruct((F, 1), jnp.float32),
                   jax.ShapeDtypeStruct((F, 1), jnp.float32)),
        grid_spec=pltpu.PrefetchScalarGridSpec(
            num_scalar_prefetch=0,
            grid=grid,
            in_specs=[pl.BlockSpec((B, tf, tt), lambda f, t: (0, f, t))],
            out_specs=(pl.BlockSpec((tf, 1), lambda f, t: (f, 0)),
                       pl.BlockSpec((tf, 1), lambda f, t: (f, 0))),
        ),
        compiler_params=pltpu.CompilerParams(
            dimension_semantics=("parallel", "arbitrary"),
            vmem_limit_bytes=int(min(vmem_cap, max(16 * 2**20, 4 * blk))),
        ),
    )(x)

    n = B * T
    mean = sums[:, 0] / n
    # NOTE: uncentered one-pass variance here (x is read only once per pass);
    # fine for normalized activations, folded into scale/shift below.
    var = jnp.maximum(sumsqs[:, 0] / n - mean * mean, 0.0)
    inv_std = jax.lax.rsqrt(var + EPS)
    scale = gamma * inv_std[None, :]            # (B, F)
    shift = beta - scale * mean[None, :]        # (B, F)

    return pl.pallas_call(
        cbn1d_apply_kernel,
        out_shape=jax.ShapeDtypeStruct((B, F, T), x.dtype),
        grid_spec=pltpu.PrefetchScalarGridSpec(
            num_scalar_prefetch=0,
            grid=grid,
            in_specs=[
                pl.BlockSpec((B, tf, tt), lambda f, t: (0, f, t)),
                pl.BlockSpec((B, tf), lambda f, t: (0, f)),
                pl.BlockSpec((B, tf), lambda f, t: (0, f)),
            ],
            out_specs=pl.BlockSpec((B, tf, tt), lambda f, t: (0, f, t)),
        ),
        compiler_params=pltpu.CompilerParams(
            dimension_semantics=("parallel", "parallel"),
            vmem_limit_bytes=int(min(vmem_cap, max(16 * 2**20, 6 * blk))),
        ),
    )(x, scale, shift)


def cbatch_norm_1d(x, c, w_gamma, b_gamma, w_beta, b_beta, *,
                   tf=None, force_two_pass=False):
    """x: (B, F, T); c: (B, C) or (B, C, 1); w_*: (F, C) (PyTorch Conv1d weight
    with the length-1 kernel dim squeezed); b_*: (F,).  Output dtype = x.dtype."""
    if c.ndim == 3:                   # torch forward accepts (B, C, 1)
        c = c[:, :, 0]
    B, F, T = x.shape
    C = c.shape[1]
    assert c.shape[0] == B
    assert w_gamma.shape == (F, C) and w_beta.shape == (F, C)
    assert b_gamma.shape == (F,) and b_beta.shape == (F,)

    # 1x1 Conv1d on c == one tiny (B,C)@(C,F) matmul; do it once here (XLA)
    # instead of per feature block on the MXU.
    c32 = jnp.asarray(c, jnp.float32)
    gamma = c32 @ jnp.asarray(w_gamma, jnp.float32).T \
        + jnp.asarray(b_gamma, jnp.float32)[None, :]               # (B, F)
    beta = c32 @ jnp.asarray(w_beta, jnp.float32).T \
        + jnp.asarray(b_beta, jnp.float32)[None, :]                # (B, F)

    itemsize = int(jnp.dtype(x.dtype).itemsize)
    budget, vmem_cap = _generation_budgets()

    if tf is None:
        tf = _pick_feature_tile(B, F, T, itemsize, budget)
    assert F % tf == 0, "feature tile must divide F"

    fused_blk_bytes = B * tf * T * itemsize
    if force_two_pass or fused_blk_bytes > budget:
        return _cbn1d_two_pass(x, gamma, beta, itemsize, budget, vmem_cap)

    vmem_limit = int(min(vmem_cap, max(16 * 2**20, 6 * fused_blk_bytes)))
    cost = pl.CostEstimate(
        flops=8 * B * F * T + 4 * B * C * F,
        transcendentals=F,
        bytes_accessed=2 * B * F * T * itemsize + 2 * B * F * 4,
    )

    return pl.pallas_call(
        cbn1d_fused_kernel,
        out_shape=jax.ShapeDtypeStruct((B, F, T), x.dtype),
        grid_spec=pltpu.PrefetchScalarGridSpec(
            num_scalar_prefetch=0,
            grid=(F // tf,),
            in_specs=[
                pl.BlockSpec((B, tf, T), lambda f: (0, f, 0)),   # x
                pl.BlockSpec((B, tf), lambda f: (0, f)),         # gamma
                pl.BlockSpec((B, tf), lambda f: (0, f)),         # beta
            ],
            out_specs=pl.BlockSpec((B, tf, T), lambda f: (0, f, 0)),
        ),
        compiler_params=pltpu.CompilerParams(
            dimension_semantics=("parallel",),
            vmem_limit_bytes=vmem_limit,
        ),
        cost_estimate=cost,
    )(x, gamma, beta)


def cbatch_norm_1d_ref(x, c, w_gamma, b_gamma, w_beta, b_beta):
    """Pure-JAX reference (mirrors the torch forward in train mode)."""
    gamma = jnp.einsum("bc,fc->bf", c, w_gamma) + b_gamma[None, :]
    beta = jnp.einsum("bc,fc->bf", c, w_beta) + b_beta[None, :]
    mean = jnp.mean(x, axis=(0, 2), keepdims=True)
    var = jnp.mean((x - mean) ** 2, axis=(0, 2), keepdims=True)
    net = (x - mean) / jnp.sqrt(var + EPS)
    return gamma[:, :, None] * net + beta[:, :, None]


if __name__ == "__main__":
    # Case 1: small F, single feature block (fused path, grid=(1,)).
    # Case 2: F=256, forced tf=128 -> 2 feature blocks (fused, feature grid).
    # Case 3: bf16 x/out (native-dtype HBM traffic), fused path.
    # Case 4: forced T-tiled two-pass path (stats + apply kernels, T grid).
    cases = [
        dict(B=4, C=16, F=32, T=128, dtype=jnp.float32, tf=None, two_pass=False),
        dict(B=2, C=8, F=256, T=128, dtype=jnp.float32, tf=128, two_pass=False),
        dict(B=2, C=8, F=256, T=256, dtype=jnp.bfloat16, tf=None, two_pass=False),
        dict(B=2, C=8, F=128, T=512, dtype=jnp.float32, tf=None, two_pass=True),
    ]
    for cfg in cases:
        B, C_DIM, F_DIM, T = cfg["B"], cfg["C"], cfg["F"], cfg["T"]
        key = jax.random.PRNGKey(0)
        kx, kc, kwg, kbg, kwb, kbb = jax.random.split(key, 6)

        x32 = jax.random.normal(kx, (B, F_DIM, T), dtype=jnp.float32)
        x = x32.astype(cfg["dtype"])
        c = jax.random.normal(kc, (B, C_DIM), dtype=jnp.float32)

        # NOTE: the module's reset_parameters() uses zeros/ones; small random
        # values are used so the conditional (conv) path is actually exercised.
        w_gamma = 0.1 * jax.random.normal(kwg, (F_DIM, C_DIM), dtype=jnp.float32)
        b_gamma = jnp.ones((F_DIM,), jnp.float32) + 0.05 * jax.random.normal(
            kbg, (F_DIM,), dtype=jnp.float32)
        w_beta = 0.1 * jax.random.normal(kwb, (F_DIM, C_DIM), dtype=jnp.float32)
        b_beta = 0.05 * jax.random.normal(kbb, (F_DIM,), dtype=jnp.float32)

        out = cbatch_norm_1d(x, c, w_gamma, b_gamma, w_beta, b_beta,
                             tf=cfg["tf"], force_two_pass=cfg["two_pass"])
        out = jax.block_until_ready(out)

        ref = cbatch_norm_1d_ref(x.astype(jnp.float32), c, w_gamma, b_gamma,
                                 w_beta, b_beta)
        tol = 5e-2 if cfg["dtype"] == jnp.bfloat16 else 5e-5
        np.testing.assert_allclose(np.asarray(out.astype(jnp.float32)),
                                   np.asarray(ref), rtol=tol, atol=tol)
    print("KERNEL_OK")
</pallas_src>

<mosaic_0001>
module attributes {stable_mosaic.version = 11 : i64} {
  func.func @cbn1d_fused_kernel(%arg0: i32, %arg1: memref<4x32x128xf32, #tpu.memory_space<vmem>>, %arg2: memref<4x32xf32, #tpu.memory_space<vmem>>, %arg3: memref<4x32xf32, #tpu.memory_space<vmem>>, %arg4: memref<4x32x128xf32, #tpu.memory_space<vmem>>) attributes {dimension_semantics = [#tpu.dimension_semantics<parallel>], iteration_bounds = array<i64: 1>, scalar_prefetch = 0 : i64, scratch_operands = 0 : i64, tpu.core_type = #tpu.core_type<tc>, window_params = [{transform_indices = @transform_0, window_bounds = array<i64: 4, 32, 128>}, {transform_indices = @transform_1, window_bounds = array<i64: 4, 32>}, {transform_indices = @transform_2, window_bounds = array<i64: 4, 32>}, {transform_indices = @transform_3, window_bounds = array<i64: 4, 32, 128>}]} {
    %c0 = arith.constant 0 : index
    %c0_0 = arith.constant 0 : index
    %c0_1 = arith.constant 0 : index
    %0 = vector.load %arg1[%c0, %c0_0, %c0_1] : memref<4x32x128xf32, #tpu.memory_space<vmem>>, vector<4x32x128xf32>
    %cst = arith.constant dense<0.000000e+00> : vector<32x128xf32>
    %1 = vector.multi_reduction <add>, %0, %cst [0] : vector<4x32x128xf32> to vector<32x128xf32>
    %cst_2 = arith.constant dense<0.000000e+00> : vector<32xf32>
    %2 = vector.multi_reduction <add>, %1, %cst_2 [1] : vector<32x128xf32> to vector<32xf32>
    %3 = vector.shape_cast %2 : vector<32xf32> to vector<32x1xf32>
    %cst_3 = arith.constant 5.120000e+02 : f32
    %4 = vector.broadcast %cst_3 : f32 to vector<32x1xf32>
    %5 = arith.divf %3, %4 : vector<32x1xf32>
    %6 = vector.shape_cast %5 : vector<32x1xf32> to vector<1x32x1xf32>
    %7 = vector.broadcast %6 : vector<1x32x1xf32> to vector<4x32x128xf32>
    %8 = arith.subf %0, %7 : vector<4x32x128xf32>
    %9 = arith.mulf %8, %8 : vector<4x32x128xf32>
    %cst_4 = arith.constant dense<0.000000e+00> : vector<32x128xf32>
    %10 = vector.multi_reduction <add>, %9, %cst_4 [0] : vector<4x32x128xf32> to vector<32x128xf32>
    %cst_5 = arith.constant dense<0.000000e+00> : vector<32xf32>
    %11 = vector.multi_reduction <add>, %10, %cst_5 [1] : vector<32x128xf32> to vector<32xf32>
    %12 = vector.shape_cast %11 : vector<32xf32> to vector<32x1xf32>
    %cst_6 = arith.constant 5.120000e+02 : f32
    %13 = vector.broadcast %cst_6 : f32 to vector<32x1xf32>
    %14 = arith.divf %12, %13 : vector<32x1xf32>
    %cst_7 = arith.constant 9.99999974E-6 : f32
    %15 = vector.broadcast %cst_7 : f32 to vector<32x1xf32>
    %16 = arith.addf %14, %15 : vector<32x1xf32>
    %17 = math.rsqrt %16 : vector<32x1xf32>
    %c0_8 = arith.constant 0 : index
    %c0_9 = arith.constant 0 : index
    %18 = vector.load %arg2[%c0_8, %c0_9] : memref<4x32xf32, #tpu.memory_space<vmem>>, vector<4x32xf32>
    %c0_10 = arith.constant 0 : index
    %c0_11 = arith.constant 0 : index
    %19 = vector.load %arg3[%c0_10, %c0_11] : memref<4x32xf32, #tpu.memory_space<vmem>>, vector<4x32xf32>
    %20 = vector.shape_cast %18 : vector<4x32xf32> to vector<4x32x1xf32>
    %21 = vector.shape_cast %17 : vector<32x1xf32> to vector<1x32x1xf32>
    %22 = vector.broadcast %21 : vector<1x32x1xf32> to vector<4x32x1xf32>
    %23 = arith.mulf %20, %22 : vector<4x32x1xf32>
    %24 = vector.broadcast %23 : vector<4x32x1xf32> to vector<4x32x128xf32>
    %25 = arith.mulf %24, %8 : vector<4x32x128xf32>
    %26 = vector.shape_cast %19 : vector<4x32xf32> to vector<4x32x1xf32>
    %27 = vector.broadcast %26 : vector<4x32x1xf32> to vector<4x32x128xf32>
    %28 = arith.addf %25, %27 : vector<4x32x128xf32>
    %c0_12 = arith.constant 0 : index
    %c0_13 = arith.constant 0 : index
    %c0_14 = arith.constant 0 : index
    %29 = vector.load %arg4[%c0_12, %c0_13, %c0_14] : memref<4x32x128xf32, #tpu.memory_space<vmem>>, vector<4x32x128xf32>
    tpu.vector_store %arg4[%c0_12, %c0_13, %c0_14], %28 {strides = array<i32>} : memref<4x32x128xf32, #tpu.memory_space<vmem>>, vector<4x32x128xf32>,
    return
  }
  func.func @transform_0(%arg0: i32) -> (i32, i32, i32) {
    %c0_i32 = arith.constant 0 : i32
    %c0_i32_0 = arith.constant 0 : i32
    %c0_i32_1 = arith.constant 0 : i32
    return %c0_i32, %arg0, %c0_i32_0 : i32, i32, i32
  }
  func.func @transform_1(%arg0: i32) -> (i32, i32) {
    %c0_i32 = arith.constant 0 : i32
    %c0_i32_0 = arith.constant 0 : i32
    return %c0_i32, %arg0 : i32, i32
  }
  func.func @transform_2(%arg0: i32) -> (i32, i32) {
    %c0_i32 = arith.constant 0 : i32
    %c0_i32_0 = arith.constant 0 : i32
    return %c0_i32, %arg0 : i32, i32
  }
  func.func @transform_3(%arg0: i32) -> (i32, i32, i32) {
    %c0_i32 = arith.constant 0 : i32
    %c0_i32_0 = arith.constant 0 : i32
    %c0_i32_1 = arith.constant 0 : i32
    return %c0_i32, %arg0, %c0_i32_0 : i32, i32, i32
  }
}

</mosaic_0001>

<llo_original>
// kernel: tpu_custom_call.1
$region0: #{tpu_custom_call.1}
  #allocation0 [shape = 'u32[]', space=smem, size = 0x4, offset = 0x4, fixed_abs, tag = 'smem constant byte address 0x4 - core index']
  #allocation1 [shape = 'u32[144,128]{1,0:T(1,128)}', space=vmem, size = 0x12000, scoped, tag = 'internal scratch']
  %s0 = inlined_call_operand.hbm [shape: f32[4,32,128], index: 0, kind: input, shape index: {}]
  %s1 = inlined_call_operand.hbm [shape: f32[4,32], index: 1, kind: input, shape index: {}]
  %s2 = inlined_call_operand.hbm [shape: f32[4,32], index: 2, kind: input, shape index: {}]
  %s3 = inlined_call_operand.hbm [shape: f32[4,32,128], index: 3, kind: output, shape index: {}]
  %s4 = sld [smem:[#allocation0]]
  $region34: #{tpu_custom_call.1} parent=0
    _
  %s6 = ssub.s32 1, %s4
  %s7 = scalar_select 0, %s6, %s4
  $region1: #{tpu_custom_call.1} parent=0
    #allocation2 [shape = 'u8[65536]{0}', space=vmem, size = 0x10000, scoped, tag = 'input window, operand 0, single buffered']
    #allocation3 [shape = 's32[1]{0}', space=sflag, size = 0x4, scoped, tag = 'scoped memory for tpu_custom_call.1']
    #allocation4 [shape = 's32[1]{0}', space=sflag, size = 0x4, scoped, tag = 'scoped memory for tpu_custom_call.1']
    #allocation5 [shape = 'u8[2048]{0}', space=vmem, size = 0x800, scoped, tag = 'input window, operand 1, single buffered']
    #allocation6 [shape = 's32[1]{0}', space=sflag, size = 0x4, scoped, tag = 'scoped memory for tpu_custom_call.1']
    #allocation7 [shape = 'u8[2048]{0}', space=vmem, size = 0x800, scoped, tag = 'input window, operand 2, single buffered']
    #allocation8 [shape = 'u8[65536]{0}', space=vmem, size = 0x10000, scoped, tag = 'output window, operand 0, single buffered']
    %8 = vsyncpa [#allocation3], 0
    %9 = vsyncpa [#allocation6], 0
    %10 = vsyncpa [#allocation4], 0
    // Predicated region
    $region2: #{tpu_custom_call.1} parent=1 // pred_check
      _
    $region3: #{tpu_custom_call.1} parent=1 // pred_check_branch
      %12 = sbr.rel (0) target = $region5
    $region4: #{tpu_custom_call.1} parent=1 // pred_region
      %s14 = ssub.s32 2048, 2048
      %15 = vsyncadd [#allocation3], %s14
      %s16 = sshll.u32 [#allocation2], 4
      %s17 = int_to_ptr.vmem [resolvable:$true] %s16
      %22 = dma.hbm_to_vmem [thread:$0]  %s0, 2048, %s17, [#allocation3], 128, 128, 8
    $region5: #{tpu_custom_call.1} parent=1 // pred_fallthru
      _
    // Predicated region
    $region6: #{tpu_custom_call.1} parent=1 // pred_check
      _
    $region7: #{tpu_custom_call.1} parent=1 // pred_check_branch
      %24 = sbr.rel (0) target = $region9
    $region8: #{tpu_custom_call.1} parent=1 // pred_region
      %s26 = ssub.s32 64, 64
      %27 = vsyncadd [#allocation6], %s26
      %s29 = sshll.u32 [#allocation5], 4
      %s30 = int_to_ptr.vmem [resolvable:$true] %s29
      %32 = dma.hbm_to_vmem [thread:$0]  %s1, 64, %s30, [#allocation6]
    $region9: #{tpu_custom_call.1} parent=1 // pred_fallthru
      _
    // Predicated region
    $region10: #{tpu_custom_call.1} parent=1 // pred_check
      _
    $region11: #{tpu_custom_call.1} parent=1 // pred_check_branch
      %34 = sbr.rel (0) target = $region13
    $region12: #{tpu_custom_call.1} parent=1 // pred_region
      %s36 = ssub.s32 64, 64
      %37 = vsyncadd [#allocation6], %s36
      %s39 = sshll.u32 [#allocation7], 4
      %s40 = int_to_ptr.vmem [resolvable:$true] %s39
      %42 = dma.hbm_to_vmem [thread:$0]  %s2, 64, %s40, [#allocation6]
    $region13: #{tpu_custom_call.1} parent=1 // pred_fallthru
      _
    // Predicated region
    $region14: #{tpu_custom_call.1} parent=1 // pred_check
      _
    $region15: #{tpu_custom_call.1} parent=1 // pred_check_branch
      %44 = sbr.rel (0) target = $region17
    $region16: #{tpu_custom_call.1} parent=1 // pred_region
      %45 = dma.done [#allocation3], 2048
    $region17: #{tpu_custom_call.1} parent=1 // pred_fallthru
      _
    // Predicated region
    $region18: #{tpu_custom_call.1} parent=1 // pred_check
      _
    $region19: #{tpu_custom_call.1} parent=1 // pred_check_branch
      %47 = sbr.rel (0) target = $region21
    $region20: #{tpu_custom_call.1} parent=1 // pred_region
      %48 = dma.done [#allocation6], 64
    $region21: #{tpu_custom_call.1} parent=1 // pred_fallthru
      _
    // Predicated region
    $region22: #{tpu_custom_call.1} parent=1 // pred_check
      _
    $region23: #{tpu_custom_call.1} parent=1 // pred_check_branch
      %50 = sbr.rel (0) target = $region25
    $region24: #{tpu_custom_call.1} parent=1 // pred_region
      %51 = dma.done [#allocation6], 64
    $region25: #{tpu_custom_call.1} parent=1 // pred_fallthru
      _
    %v52 = vld [vmem:[#allocation2] sm:$0xff]
    %v53 = vld [vmem:[#allocation2 + $0x8] sm:$0xff]
    %v54 = vld [vmem:[#allocation2 + $0x10] sm:$0xff]
    %v55 = vld [vmem:[#allocation2 + $0x18] sm:$0xff]
    %v56 = vld [vmem:[#allocation2 + $0x20] sm:$0xff]
    %v57 = vld [vmem:[#allocation2 + $0x28] sm:$0xff]
    %v58 = vld [vmem:[#allocation2 + $0x30] sm:$0xff]
    %v59 = vld [vmem:[#allocation2 + $0x38] sm:$0xff]
    %v60 = vld [vmem:[#allocation2 + $0x40] sm:$0xff]
    %v61 = vld [vmem:[#allocation2 + $0x48] sm:$0xff]
    %v62 = vld [vmem:[#allocation2 + $0x50] sm:$0xff]
    %v63 = vld [vmem:[#allocation2 + $0x58] sm:$0xff]
    %v64 = vld [vmem:[#allocation2 + $0x60] sm:$0xff]
    %v65 = vld [vmem:[#allocation2 + $0x68] sm:$0xff]
    %v66 = vld [vmem:[#allocation2 + $0x70] sm:$0xff]
    %v67 = vld [vmem:[#allocation2 + $0x78] sm:$0xff]
    %v68 = vadd.f32 %v52, %v56
    %v69 = vadd.f32 %v68, %v60
    %v70 = vadd.f32 %v69, %v64
    %v71 = vadd.f32 %v53, %v57
    %v72 = vadd.f32 %v71, %v61
    %v73 = vadd.f32 %v72, %v65
    %v74 = vadd.f32 %v54, %v58
    %v75 = vadd.f32 %v74, %v62
    %v76 = vadd.f32 %v75, %v66
    %v77 = vadd.f32 %v55, %v59
    %v78 = vadd.f32 %v77, %v63
    %v79 = vadd.f32 %v78, %v67
    %80 = vadd.xlane.f32.xlu0 %v70
    %v81 = vpop.xlane.xlu0 %80
    %82 = vadd.xlane.f32.xlu0 %v73
    %v83 = vpop.xlane.xlu0 %82
    %84 = vadd.xlane.f32.xlu0 %v76
    %v85 = vpop.xlane.xlu0 %84
    %86 = vadd.xlane.f32.xlu0 %v79
    %v87 = vpop.xlane.xlu0 %86
    %v88 = vrcp.pop 512.0
    %v89 = vmul.f32 %v81, %v88
    %v90 = vmul.f32 %v83, %v88
    %v91 = vmul.f32 %v85, %v88
    %v92 = vmul.f32 %v87, %v88
    %v93 = vsub.f32 %v52, %v89
    %v94 = vsub.f32 %v53, %v90
    %v95 = vsub.f32 %v54, %v91
    %v96 = vsub.f32 %v55, %v92
    %v97 = vsub.f32 %v56, %v89
    %v98 = vsub.f32 %v57, %v90
    %v99 = vsub.f32 %v58, %v91
    %v100 = vsub.f32 %v59, %v92
    %v101 = vsub.f32 %v60, %v89
    %v102 = vsub.f32 %v61, %v90
    %v103 = vsub.f32 %v62, %v91
    %v104 = vsub.f32 %v63, %v92
    %v105 = vsub.f32 %v64, %v89
    %v106 = vsub.f32 %v65, %v90
    %v107 = vsub.f32 %v66, %v91
    %v108 = vsub.f32 %v67, %v92
    %v109 = vmul.f32 %v93, %v93
    %v110 = vmul.f32 %v94, %v94
    %v111 = vmul.f32 %v95, %v95
    %v112 = vmul.f32 %v96, %v96
    %v113 = vmul.f32 %v97, %v97
    %v114 = vmul.f32 %v98, %v98
    %v115 = vmul.f32 %v99, %v99
    %v116 = vmul.f32 %v100, %v100
    %v117 = vmul.f32 %v101, %v101
    %v118 = vmul.f32 %v102, %v102
    %v119 = vmul.f32 %v103, %v103
    %v120 = vmul.f32 %v104, %v104
    %v121 = vmul.f32 %v105, %v105
    %v122 = vmul.f32 %v106, %v106
    %v123 = vmul.f32 %v107, %v107
    %v124 = vmul.f32 %v108, %v108
    %v125 = vadd.f32 %v109, %v113
    %v126 = vadd.f32 %v125, %v117
    %v127 = vadd.f32 %v126, %v121
    %v128 = vadd.f32 %v110, %v114
    %v129 = vadd.f32 %v128, %v118
    %v130 = vadd.f32 %v129, %v122
    %v131 = vadd.f32 %v111, %v115
    %v132 = vadd.f32 %v131, %v119
    %v133 = vadd.f32 %v132, %v123
    %v134 = vadd.f32 %v112, %v116
    %v135 = vadd.f32 %v134, %v120
    %v136 = vadd.f32 %v135, %v124
    %137 = vadd.xlane.f32.xlu0 %v127
    %v138 = vpop.xlane.xlu0 %137
    %139 = vadd.xlane.f32.xlu0 %v130
    %v140 = vpop.xlane.xlu0 %139
    %141 = vadd.xlane.f32.xlu0 %v133
    %v142 = vpop.xlane.xlu0 %141
    %143 = vadd.xlane.f32.xlu0 %v136
    %v144 = vpop.xlane.xlu0 %143
    %v145 = vmul.f32 %v138, %v88
    %v146 = vmul.f32 %v140, %v88
    %v147 = vmul.f32 %v142, %v88
    %v148 = vmul.f32 %v144, %v88
    %v149 = vadd.f32 %v145, 1e-05
    %v150 = vadd.f32 %v146, 1e-05
    %v151 = vadd.f32 %v147, 1e-05
    %v152 = vadd.f32 %v148, 1e-05
    %v153 = vrsqrt.pop %v149
    %v154 = vrsqrt.pop %v150
    %v155 = vrsqrt.pop %v151
    %v156 = vrsqrt.pop %v152
    %v157 = vld [vmem:[#allocation5] sm:$0xf]
    %v158 = vld [vmem:[#allocation7] sm:$0xf]
    %v159 = vlaneseq
    %v160 = vshrl.u32 %v159, 7
    %v161 = vsub.s32 0, %v160
    %v162 = vrot.slane %v157, %v161
    %164 = vbcast.lane.b32.xlu0 %v162, 256
    %v165 = vpop.permute.xlu0 %164
    %s167 = sor.u32 256, 8
    %168 = vbcast.lane.b32.xlu0 %v162, %s167
    %v169 = vpop.permute.xlu0 %168
    %s171 = sor.u32 256, 16
    %172 = vbcast.lane.b32.xlu0 %v162, %s171
    %v173 = vpop.permute.xlu0 %172
    %s175 = sor.u32 256, 24
    %176 = vbcast.lane.b32.xlu0 %v162, %s175
    %v177 = vpop.permute.xlu0 %176
    %v178 = vlaneseq
    %v179 = vshrl.u32 %v178, 7
    %v180 = vsub.s32 1, %v179
    %v181 = vrot.slane %v157, %v180
    %183 = vbcast.lane.b32.xlu0 %v181, 256
    %v184 = vpop.permute.xlu0 %183
    %s186 = sor.u32 256, 8
    %187 = vbcast.lane.b32.xlu0 %v181, %s186
    %v188 = vpop.permute.xlu0 %187
    %s190 = sor.u32 256, 16
    %191 = vbcast.lane.b32.xlu0 %v181, %s190
    %v192 = vpop.permute.xlu0 %191
    %s194 = sor.u32 256, 24
    %195 = vbcast.lane.b32.xlu0 %v181, %s194
    %v196 = vpop.permute.xlu0 %195
    %v197 = vlaneseq
    %v198 = vshrl.u32 %v197, 7
    %v199 = vsub.s32 2, %v198
    %v200 = vrot.slane %v157, %v199
    %202 = vbcast.lane.b32.xlu0 %v200, 256
    %v203 = vpop.permute.xlu0 %202
    %s205 = sor.u32 256, 8
    %206 = vbcast.lane.b32.xlu0 %v200, %s205
    %v207 = vpop.permute.xlu0 %206
    %s209 = sor.u32 256, 16
    %210 = vbcast.lane.b32.xlu0 %v200, %s209
    %v211 = vpop.permute.xlu0 %210
    %s213 = sor.u32 256, 24
    %214 = vbcast.lane.b32.xlu0 %v200, %s213
    %v215 = vpop.permute.xlu0 %214
    %v216 = vlaneseq
    %v217 = vshrl.u32 %v216, 7
    %v218 = vsub.s32 3, %v217
    %v219 = vrot.slane %v157, %v218
    %221 = vbcast.lane.b32.xlu0 %v219, 256
    %v222 = vpop.permute.xlu0 %221
    %s224 = sor.u32 256, 8
    %225 = vbcast.lane.b32.xlu0 %v219, %s224
    %v226 = vpop.permute.xlu0 %225
    %s228 = sor.u32 256, 16
    %229 = vbcast.lane.b32.xlu0 %v219, %s228
    %v230 = vpop.permute.xlu0 %229
    %s232 = sor.u32 256, 24
    %233 = vbcast.lane.b32.xlu0 %v219, %s232
    %v234 = vpop.permute.xlu0 %233
    %v235 = vmul.f32 %v165, %v153
    %v236 = vmul.f32 %v169, %v154
    %v237 = vmul.f32 %v173, %v155
    %v238 = vmul.f32 %v177, %v156
    %v239 = vmul.f32 %v184, %v153
    %v240 = vmul.f32 %v188, %v154
    %v241 = vmul.f32 %v192, %v155
    %v242 = vmul.f32 %v196, %v156
    %v243 = vmul.f32 %v203, %v153
    %v244 = vmul.f32 %v207, %v154
    %v245 = vmul.f32 %v211, %v155
    %v246 = vmul.f32 %v215, %v156
    %v247 = vmul.f32 %v222, %v153
    %v248 = vmul.f32 %v226, %v154
    %v249 = vmul.f32 %v230, %v155
    %v250 = vmul.f32 %v234, %v156
    %v251 = vmul.f32 %v235, %v93
    %v252 = vmul.f32 %v236, %v94
    %v253 = vmul.f32 %v237, %v95
    %v254 = vmul.f32 %v238, %v96
    %v255 = vmul.f32 %v239, %v97
    %v256 = vmul.f32 %v240, %v98
    %v257 = vmul.f32 %v241, %v99
    %v258 = vmul.f32 %v242, %v100
    %v259 = vmul.f32 %v243, %v101
    %v260 = vmul.f32 %v244, %v102
    %v261 = vmul.f32 %v245, %v103
    %v262 = vmul.f32 %v246, %v104
    %v263 = vmul.f32 %v247, %v105
    %v264 = vmul.f32 %v248, %v106
    %v265 = vmul.f32 %v249, %v107
    %v266 = vmul.f32 %v250, %v108
    %v267 = vlaneseq
    %v268 = vshrl.u32 %v267, 7
    %v269 = vsub.s32 0, %v268
    %v270 = vrot.slane %v158, %v269
    %272 = vbcast.lane.b32.xlu0 %v270, 256
    %v273 = vpop.permute.xlu0 %272
    %s275 = sor.u32 256, 8
    %276 = vbcast.lane.b32.xlu0 %v270, %s275
    %v277 = vpop.permute.xlu0 %276
    %s279 = sor.u32 256, 16
    %280 = vbcast.lane.b32.xlu0 %v270, %s279
    %v281 = vpop.permute.xlu0 %280
    %s283 = sor.u32 256, 24
    %284 = vbcast.lane.b32.xlu0 %v270, %s283
    %v285 = vpop.permute.xlu0 %284
    %v286 = vlaneseq
    %v287 = vshrl.u32 %v286, 7
    %v288 = vsub.s32 1, %v287
    %v289 = vrot.slane %v158, %v288
    %291 = vbcast.lane.b32.xlu0 %v289, 256
    %v292 = vpop.permute.xlu0 %291
    %s294 = sor.u32 256, 8
    %295 = vbcast.lane.b32.xlu0 %v289, %s294
    %v296 = vpop.permute.xlu0 %295
    %s298 = sor.u32 256, 16
    %299 = vbcast.lane.b32.xlu0 %v289, %s298
    %v300 = vpop.permute.xlu0 %299
    %s302 = sor.u32 256, 24
    %303 = vbcast.lane.b32.xlu0 %v289, %s302
    %v304 = vpop.permute.xlu0 %303
    %v305 = vlaneseq
    %v306 = vshrl.u32 %v305, 7
    %v307 = vsub.s32 2, %v306
    %v308 = vrot.slane %v158, %v307
    %310 = vbcast.lane.b32.xlu0 %v308, 256
    %v311 = vpop.permute.xlu0 %310
    %s313 = sor.u32 256, 8
    %314 = vbcast.lane.b32.xlu0 %v308, %s313
    %v315 = vpop.permute.xlu0 %314
    %s317 = sor.u32 256, 16
    %318 = vbcast.lane.b32.xlu0 %v308, %s317
    %v319 = vpop.permute.xlu0 %318
    %s321 = sor.u32 256, 24
    %322 = vbcast.lane.b32.xlu0 %v308, %s321
    %v323 = vpop.permute.xlu0 %322
    %v324 = vlaneseq
    %v325 = vshrl.u32 %v324, 7
    %v326 = vsub.s32 3, %v325
    %v327 = vrot.slane %v158, %v326
    %329 = vbcast.lane.b32.xlu0 %v327, 256
    %v330 = vpop.permute.xlu0 %329
    %s332 = sor.u32 256, 8
    %333 = vbcast.lane.b32.xlu0 %v327, %s332
    %v334 = vpop.permute.xlu0 %333
    %s336 = sor.u32 256, 16
    %337 = vbcast.lane.b32.xlu0 %v327, %s336
    %v338 = vpop.permute.xlu0 %337
    %s340 = sor.u32 256, 24
    %341 = vbcast.lane.b32.xlu0 %v327, %s340
    %v342 = vpop.permute.xlu0 %341
    %v343 = vadd.f32 %v251, %v273
    %v344 = vadd.f32 %v252, %v277
    %v345 = vadd.f32 %v253, %v281
    %v346 = vadd.f32 %v254, %v285
    %v347 = vadd.f32 %v255, %v292
    %v348 = vadd.f32 %v256, %v296
    %v349 = vadd.f32 %v257, %v300
    %v350 = vadd.f32 %v258, %v304
    %v351 = vadd.f32 %v259, %v311
    %v352 = vadd.f32 %v260, %v315
    %v353 = vadd.f32 %v261, %v319
    %v354 = vadd.f32 %v262, %v323
    %v355 = vadd.f32 %v263, %v330
    %v356 = vadd.f32 %v264, %v334
    %v357 = vadd.f32 %v265, %v338
    %v358 = vadd.f32 %v266, %v342
    %359 = vst [vmem:[#allocation8] sm:$0xff] %v343
    %360 = vst [vmem:[#allocation8 + $0x8] sm:$0xff] %v344
    %361 = vst [vmem:[#allocation8 + $0x10] sm:$0xff] %v345
    %362 = vst [vmem:[#allocation8 + $0x18] sm:$0xff] %v346
    %363 = vst [vmem:[#allocation8 + $0x20] sm:$0xff] %v347
    %364 = vst [vmem:[#allocation8 + $0x28] sm:$0xff] %v348
    %365 = vst [vmem:[#allocation8 + $0x30] sm:$0xff] %v349
    %366 = vst [vmem:[#allocation8 + $0x38] sm:$0xff] %v350
    %367 = vst [vmem:[#allocation8 + $0x40] sm:$0xff] %v351
    %368 = vst [vmem:[#allocation8 + $0x48] sm:$0xff] %v352
    %369 = vst [vmem:[#allocation8 + $0x50] sm:$0xff] %v353
    %370 = vst [vmem:[#allocation8 + $0x58] sm:$0xff] %v354
    %371 = vst [vmem:[#allocation8 + $0x60] sm:$0xff] %v355
    %372 = vst [vmem:[#allocation8 + $0x68] sm:$0xff] %v356
    %373 = vst [vmem:[#allocation8 + $0x70] sm:$0xff] %v357
    %374 = vst [vmem:[#allocation8 + $0x78] sm:$0xff] %v358
    // Predicated region
    $region26: #{tpu_custom_call.1} parent=1 // pred_check
      _
    $region27: #{tpu_custom_call.1} parent=1 // pred_check_branch
      %376 = sbr.rel (0) target = $region29
    $region28: #{tpu_custom_call.1} parent=1 // pred_region
      %s378 = ssub.s32 2048, 2048
      %379 = vsyncadd [#allocation4], %s378
      %s380 = sshll.u32 [#allocation8], 4
      %s381 = int_to_ptr.vmem [resolvable:$true] %s380
      %386 = dma.vmem_to_hbm [thread:$0]  %s381, 2048, %s3, [#allocation4], 128, 128, 8
    $region29: #{tpu_custom_call.1} parent=1 // pred_fallthru
      _
    // Predicated region
    $region30: #{tpu_custom_call.1} parent=1 // pred_check
      _
    $region31: #{tpu_custom_call.1} parent=1 // pred_check_branch
      %388 = sbr.rel (0) target = $region33
    $region32: #{tpu_custom_call.1} parent=1 // pred_region
      %389 = dma.done [#allocation4], 2048
    $region33: #{tpu_custom_call.1} parent=1 // pred_fallthru
      _
    %390 = vsyncpa [#allocation3], 1
    %391 = vsyncpa [#allocation6], 1
    %392 = vsyncpa [#allocation4], 1

</llo_original>
